<compile_context>
chip_gen: v7x
topology: tpu7x:2x2x1
jax: 0.10.0
libtpu: 0.0.40
codegen_flags: <defaults>
</compile_context>

<pallas_src>
import functools

import jax
import jax.numpy as jnp
from jax import lax
from jax.experimental import pallas as pl
from jax.experimental.pallas import tpu as pltpu


def _round_up(n, m):
    return ((n + m - 1) // m) * m


def _has_bf16_vpu():
    """True on TPU generations with bf16 VPU ALUs (v6e / v7x); False on v5e and older / unknown."""
    try:
        kind = jax.devices()[0].device_kind.lower()
    except Exception:
        return False
    if "tpu" not in kind:
        return False
    return not any(v in kind for v in ("v2", "v3", "v4", "v5"))


def _value_mlp_kernel(x_ref, w1_ref, b1_ref, w2_ref, b2_ref, w3_ref, b3_ref, o_ref, *,
                      bf16_epilogue):
    # x_ref : (block_b, state_dim) f32  -- one untransposed batch tile
    # w1_ref: (hidden, state_dim) bf16, w2_ref: (hidden, hidden) bf16
    # b1_ref/b2_ref/w3_ref: (hidden, 1) f32 columns (lane-broadcast)
    # b3_ref: (1, 1) f32 scalar in SMEM
    # o_ref : (1, block_b) f32 lane-dense output row
    f32 = jnp.float32
    bf16 = jnp.bfloat16

    x_bf = x_ref[...].astype(bf16)  # (block_b, state_dim)

    # Layer 1: contract state_dim of W1 (dim 1) with state_dim of x (dim 1) -> (hidden, block_b).
    # Keeps batch on the lane axis without a wrapper-side transpose of x.
    a1 = lax.dot_general(w1_ref[...], x_bf,
                         dimension_numbers=(((1,), (1,)), ((), ())),
                         preferred_element_type=f32)
    if bf16_epilogue:
        h1 = jnp.maximum(a1.astype(bf16) + b1_ref[...].astype(bf16), 0.0)
    else:
        h1 = jnp.maximum(a1 + b1_ref[...], 0.0).astype(bf16)

    # Layer 2: (hidden, hidden) @ (hidden, block_b) -> (hidden, block_b).
    a2 = jnp.dot(w2_ref[...], h1, preferred_element_type=f32)

    b3 = b3_ref[0, 0]
    if bf16_epilogue:
        h2 = jnp.maximum(a2.astype(bf16) + b2_ref[...].astype(bf16), 0.0)
        prod = h2 * w3_ref[...].astype(bf16)                       # (hidden, block_b)
        v = jnp.sum(prod.astype(f32), axis=0, keepdims=True) + b3  # sublane reduce (XLU)
    else:
        h2 = jnp.maximum(a2 + b2_ref[...], 0.0)
        v = jnp.sum(h2 * w3_ref[...], axis=0, keepdims=True) + b3

    o_ref[...] = v.astype(o_ref.dtype)


@functools.partial(jax.jit, static_argnames=("block_b", "bf16_epilogue"))
def value_function_forward(x, w1, b1, w2, b2, w3, b3, *, block_b=4096, bf16_epilogue=None):
    """Fused value-network forward.

    x:  (B, state_dim) float32
    w1: (hidden, state_dim), b1: (hidden,)   -- PyTorch nn.Linear layout (out, in)
    w2: (hidden, hidden),    b2: (hidden,)
    w3: (1, hidden),         b3: (1,)
    returns (B, 1) float32
    """
    B, state_dim = x.shape
    hidden = w1.shape[0]
    assert block_b % 128 == 0, "block_b must be a multiple of 128 (lane width)"
    if bf16_epilogue is None:
        bf16_epilogue = _has_bf16_vpu()

    # Batch-tile size: as large as requested but no larger than needed; ensure >=2 tiles when
    # B is big enough so the "parallel" axis can feed both v7x TensorCores.
    bb = min(block_b, _round_up(B, 128))
    if B > 128 and pl.cdiv(B, bb) == 1:
        bb = _round_up(pl.cdiv(B, 2), 128)
    n_tiles = pl.cdiv(B, bb)

    # bf16 weights for the MXU; f32 bias / w3 columns (cast in-kernel if bf16 epilogue is used).
    w1_bf = w1.astype(jnp.bfloat16)
    w2_bf = w2.astype(jnp.bfloat16)
    b1_c = b1.reshape(hidden, 1).astype(jnp.float32)
    b2_c = b2.reshape(hidden, 1).astype(jnp.float32)
    w3_c = w3.reshape(hidden, 1).astype(jnp.float32)   # (1, hidden) -> (hidden, 1) column
    b3_s = b3.reshape(1, 1).astype(jnp.float32)        # SMEM scalar

    # Constant block index -> block stays resident in VMEM across grid steps (no re-DMA).
    const = lambda shape: pl.BlockSpec(shape, lambda i: (0,) * len(shape))

    kernel = functools.partial(_value_mlp_kernel, bf16_epilogue=bool(bf16_epilogue))

    out = pl.pallas_call(
        kernel,
        out_shape=jax.ShapeDtypeStruct((1, B), jnp.float32),
        grid_spec=pltpu.PrefetchScalarGridSpec(
            num_scalar_prefetch=0,
            grid=(n_tiles,),
            in_specs=[
                pl.BlockSpec((bb, state_dim), lambda i: (i, 0)),     # x tile (no transpose / pad)
                const((hidden, state_dim)),                          # W1 (VMEM-resident)
                const((hidden, 1)),                                  # b1
                const((hidden, hidden)),                             # W2
                const((hidden, 1)),                                  # b2
                const((hidden, 1)),                                  # w3 column
                pl.BlockSpec(memory_space=pltpu.MemorySpace.SMEM),   # b3 scalar
            ],
            out_specs=pl.BlockSpec((1, bb), lambda i: (0, i)),       # lane-dense output row
        ),
        compiler_params=pltpu.CompilerParams(
            dimension_semantics=("parallel",),   # megacore-shardable on v7x
        ),
    )(x, w1_bf, b1_c, w2_bf, b2_c, w3_c, b3_s)

    return out.reshape(B, 1)


def init_params(key, state_dim, hidden_dim=64):
    """Deterministic init mimicking PyTorch nn.Linear default, in PyTorch (out, in) layout."""
    ks = jax.random.split(key, 6)

    def linear(kw, kb, fan_in, fan_out):
        bound = 1.0 / float(fan_in) ** 0.5
        w = jax.random.uniform(kw, (fan_out, fan_in), jnp.float32, -bound, bound)
        b = jax.random.uniform(kb, (fan_out,), jnp.float32, -bound, bound)
        return w, b

    w1, b1 = linear(ks[0], ks[1], state_dim, hidden_dim)
    w2, b2 = linear(ks[2], ks[3], hidden_dim, hidden_dim)
    w3, b3 = linear(ks[4], ks[5], hidden_dim, 1)
    return w1, b1, w2, b2, w3, b3


if __name__ == "__main__":
    key = jax.random.PRNGKey(0)
    k_x, k_x2, k_p = jax.random.split(key, 3)

    state_dim, hidden_dim = 16, 64
    params = init_params(k_p, state_dim, hidden_dim)
    w1, b1, w2, b2, w3, b3 = params

    def ref_fwd(xx):
        h = jnp.maximum(xx @ w1.T + b1, 0.0)
        h = jnp.maximum(h @ w2.T + b2, 0.0)
        return h @ w3.T + b3

    # Small batch (single ragged tile).
    x = jax.random.normal(k_x, (8, state_dim), dtype=jnp.float32)
    out = jax.block_until_ready(value_function_forward(x, *params))
    assert out.shape == (8, 1)
    err = float(jnp.max(jnp.abs(out - ref_fwd(x))))
    # bf16 MXU inputs with f32 accumulation -> loosened tolerance vs the f32 reference.
    assert err < 5e-2, f"small-batch max abs err={err}"

    # Larger batch exercising multiple grid tiles + a ragged last tile (no explicit padding).
    x2 = jax.random.normal(k_x2, (300, state_dim), dtype=jnp.float32)
    out2 = jax.block_until_ready(value_function_forward(x2, *params, block_b=256))
    assert out2.shape == (300, 1)
    err2 = float(jnp.max(jnp.abs(out2 - ref_fwd(x2))))
    assert err2 < 5e-2, f"multi-tile max abs err={err2}"

    print("KERNEL_OK")
</pallas_src>

<mosaic_0001>
module attributes {stable_mosaic.version = 11 : i64} {
  func.func @_value_mlp_kernel(%arg0: i32, %arg1: memref<128x16xf32, #tpu.memory_space<vmem>>, %arg2: memref<64x16xbf16, #tpu.memory_space<vmem>>, %arg3: memref<64x1xf32, #tpu.memory_space<vmem>>, %arg4: memref<64x64xbf16, #tpu.memory_space<vmem>>, %arg5: memref<64x1xf32, #tpu.memory_space<vmem>>, %arg6: memref<64x1xf32, #tpu.memory_space<vmem>>, %arg7: memref<1x1xf32, #tpu.memory_space<smem>>, %arg8: memref<1x128xf32, #tpu.memory_space<vmem>>) attributes {dimension_semantics = [#tpu.dimension_semantics<parallel>], iteration_bounds = array<i64: 1>, scalar_prefetch = 0 : i64, scratch_operands = 0 : i64, tpu.core_type = #tpu.core_type<tc>, window_params = [{transform_indices = @transform_0, window_bounds = array<i64: 128, 16>}, {pipeline_mode = #tpu.pipeline_mode<synchronous>, transform_indices = @transform_1, window_bounds = array<i64: 64, 16>}, {pipeline_mode = #tpu.pipeline_mode<synchronous>, transform_indices = @transform_2, window_bounds = array<i64: 64, 1>}, {pipeline_mode = #tpu.pipeline_mode<synchronous>, transform_indices = @transform_3, window_bounds = array<i64: 64, 64>}, {pipeline_mode = #tpu.pipeline_mode<synchronous>, transform_indices = @transform_4, window_bounds = array<i64: 64, 1>}, {pipeline_mode = #tpu.pipeline_mode<synchronous>, transform_indices = @transform_5, window_bounds = array<i64: 64, 1>}, {transform_indices = @transform_6, window_bounds = array<i64: 1, 1>}, {transform_indices = @transform_7, window_bounds = array<i64: 1, 128>}]} {
    %c0 = arith.constant 0 : index
    %c0_0 = arith.constant 0 : index
    %0 = vector.load %arg1[%c0, %c0_0] : memref<128x16xf32, #tpu.memory_space<vmem>>, vector<128x16xf32>
    %1 = arith.truncf %0 : vector<128x16xf32> to vector<128x16xbf16>
    %c0_1 = arith.constant 0 : index
    %c0_2 = arith.constant 0 : index
    %2 = vector.load %arg2[%c0_1, %c0_2] : memref<64x16xbf16, #tpu.memory_space<vmem>>, vector<64x16xbf16>
    %cst = arith.constant dense<0.000000e+00> : vector<64x128xf32>
    %3 = tpu.matmul %2, %1, %cst {dimension_numbers = #tpu.dot_dimension_numbers<[1], [1], [0], [0], [0, 0, 1, 0], [], []>} : vector<64x16xbf16>, vector<128x16xbf16>, vector<64x128xf32> -> vector<64x128xf32>
    %c0_3 = arith.constant 0 : index
    %c0_4 = arith.constant 0 : index
    %4 = vector.load %arg3[%c0_3, %c0_4] : memref<64x1xf32, #tpu.memory_space<vmem>>, vector<64x1xf32>
    %5 = vector.broadcast %4 : vector<64x1xf32> to vector<64x128xf32>
    %6 = arith.addf %3, %5 : vector<64x128xf32>
    %cst_5 = arith.constant 0.000000e+00 : f32
    %7 = vector.broadcast %cst_5 : f32 to vector<64x128xf32>
    %8 = arith.maximumf %6, %7 : vector<64x128xf32>
    %9 = arith.truncf %8 : vector<64x128xf32> to vector<64x128xbf16>
    %c0_6 = arith.constant 0 : index
    %c0_7 = arith.constant 0 : index
    %10 = vector.load %arg4[%c0_6, %c0_7] : memref<64x64xbf16, #tpu.memory_space<vmem>>, vector<64x64xbf16>
    %cst_8 = arith.constant dense<0.000000e+00> : vector<64x128xf32>
    %11 = tpu.matmul %10, %9, %cst_8 {dimension_numbers = #tpu.dot_dimension_numbers<[1], [0], [0], [1], [0, 0, 1, 1], [], []>} : vector<64x64xbf16>, vector<64x128xbf16>, vector<64x128xf32> -> vector<64x128xf32>
    %c0_9 = arith.constant 0 : index
    %c0_10 = arith.constant 0 : index
    %12 = memref.load %arg7[%c0_9, %c0_10] : memref<1x1xf32, #tpu.memory_space<smem>>
    %c0_11 = arith.constant 0 : index
    %c0_12 = arith.constant 0 : index
    %13 = vector.load %arg5[%c0_11, %c0_12] : memref<64x1xf32, #tpu.memory_space<vmem>>, vector<64x1xf32>
    %14 = vector.broadcast %13 : vector<64x1xf32> to vector<64x128xf32>
    %15 = arith.addf %11, %14 : vector<64x128xf32>
    %cst_13 = arith.constant 0.000000e+00 : f32
    %16 = vector.broadcast %cst_13 : f32 to vector<64x128xf32>
    %17 = arith.maximumf %15, %16 : vector<64x128xf32>
    %c0_14 = arith.constant 0 : index
    %c0_15 = arith.constant 0 : index
    %18 = vector.load %arg6[%c0_14, %c0_15] : memref<64x1xf32, #tpu.memory_space<vmem>>, vector<64x1xf32>
    %19 = vector.broadcast %18 : vector<64x1xf32> to vector<64x128xf32>
    %20 = arith.mulf %17, %19 : vector<64x128xf32>
    %cst_16 = arith.constant dense<0.000000e+00> : vector<128xf32>
    %21 = vector.multi_reduction <add>, %20, %cst_16 [0] : vector<64x128xf32> to vector<128xf32>
    %22 = vector.shape_cast %21 : vector<128xf32> to vector<1x128xf32>
    %23 = vector.broadcast %12 : f32 to vector<1x128xf32>
    %24 = arith.addf %22, %23 : vector<1x128xf32>
    %c0_17 = arith.constant 0 : index
    %c0_18 = arith.constant 0 : index
    %25 = vector.load %arg8[%c0_17, %c0_18] : memref<1x128xf32, #tpu.memory_space<vmem>>, vector<1x128xf32>
    tpu.vector_store %arg8[%c0_17, %c0_18], %24 {strides = array<i32>} : memref<1x128xf32, #tpu.memory_space<vmem>>, vector<1x128xf32>,
    return
  }
  func.func @transform_0(%arg0: i32) -> (i32, i32) {
    %c0_i32 = arith.constant 0 : i32
    %c0_i32_0 = arith.constant 0 : i32
    return %arg0, %c0_i32 : i32, i32
  }
  func.func @transform_1(%arg0: i32) -> (i32, i32) {
    %c0_i32 = arith.constant 0 : i32
    %c0_i32_0 = arith.constant 0 : i32
    %c0_i32_1 = arith.constant 0 : i32
    return %c0_i32, %c0_i32_0 : i32, i32
  }
  func.func @transform_2(%arg0: i32) -> (i32, i32) {
    %c0_i32 = arith.constant 0 : i32
    %c0_i32_0 = arith.constant 0 : i32
    %c0_i32_1 = arith.constant 0 : i32
    return %c0_i32, %c0_i32_0 : i32, i32
  }
  func.func @transform_3(%arg0: i32) -> (i32, i32) {
    %c0_i32 = arith.constant 0 : i32
    %c0_i32_0 = arith.constant 0 : i32
    %c0_i32_1 = arith.constant 0 : i32
    return %c0_i32, %c0_i32_0 : i32, i32
  }
  func.func @transform_4(%arg0: i32) -> (i32, i32) {
    %c0_i32 = arith.constant 0 : i32
    %c0_i32_0 = arith.constant 0 : i32
    %c0_i32_1 = arith.constant 0 : i32
    return %c0_i32, %c0_i32_0 : i32, i32
  }
  func.func @transform_5(%arg0: i32) -> (i32, i32) {
    %c0_i32 = arith.constant 0 : i32
    %c0_i32_0 = arith.constant 0 : i32
    %c0_i32_1 = arith.constant 0 : i32
    return %c0_i32, %c0_i32_0 : i32, i32
  }
  func.func @transform_6(%arg0: i32) -> (i32, i32) {
    %c0_i32 = arith.constant 0 : i32
    %c0_i32_0 = arith.constant 0 : i32
    %c0_i32_1 = arith.constant 0 : i32
    return %c0_i32, %c0_i32_0 : i32, i32
  }
  func.func @transform_7(%arg0: i32) -> (i32, i32) {
    %c0_i32 = arith.constant 0 : i32
    %c0_i32_0 = arith.constant 0 : i32
    return %c0_i32, %arg0 : i32, i32
  }
}

</mosaic_0001>

<llo_original>
// kernel: value_function_forward.1
$region0: #{value_function_forward.1}
  #allocation0 [shape = 'u32[]', space=smem, size = 0x4, offset = 0x4, fixed_abs, tag = 'smem constant byte address 0x4 - core index']
  #allocation1 [shape = 'u32[144,128]{1,0:T(1,128)}', space=vmem, size = 0x12000, scoped, tag = 'internal scratch']
  #allocation2 [shape = 'f32[1,1]{1,0:T(1,128)S(6)}', space=smem, size = 0x200, scoped, tag = 'scoped memory for value_function_forward.1']
  %s0 = inlined_call_operand.vmem [shape: f32[8,16], index: 0, kind: input, shape index: {}]
  %s1 = inlined_call_operand.vmem [shape: bf16[64,16], index: 1, kind: input, shape index: {}]
  %s2 = inlined_call_operand.vmem [shape: f32[64,1], index: 2, kind: input, shape index: {}]
  %s3 = inlined_call_operand.vmem [shape: bf16[64,64], index: 3, kind: input, shape index: {}]
  %s4 = inlined_call_operand.vmem [shape: f32[64,1], index: 4, kind: input, shape index: {}]
  %s5 = inlined_call_operand.vmem [shape: f32[64,1], index: 5, kind: input, shape index: {}]
  %s6 = inlined_call_operand.<no memory space> [shape: f32[1,1], index: 6, kind: input, shape index: {}]
  %s7 = inlined_call_operand.hbm [shape: f32[1,8], index: 7, kind: output, shape index: {}]
  %s8 = sld [smem:[#allocation0]]
  $region38: #{value_function_forward.1} parent=0
    _
  %s10 = ssub.s32 1, %s8
  %s11 = scalar_select 0, %s10, %s8
  %12 = sst [smem:[#allocation2]] %s6
  $region1: #{value_function_forward.1} parent=0
    #allocation3 [shape = 'u8[512]{0}', space=vmem, size = 0x400, scoped, tag = 'output window, operand 0, single buffered']
    #allocation4 [shape = 's32[1]{0}', space=sflag, size = 0x4, scoped, tag = 'scoped memory for value_function_forward.1']
    %13 = vsyncpa [#allocation4], 0
    // Predicated region
    $region2: #{value_function_forward.1} parent=1 // pred_check
      _
    $region3: #{value_function_forward.1} parent=1 // pred_check_branch
      %15 = sbr.rel (0) target = $region5
    $region4: #{value_function_forward.1} parent=1 // pred_region
      _
    $region5: #{value_function_forward.1} parent=1 // pred_fallthru
      _
    // Predicated region
    $region6: #{value_function_forward.1} parent=1 // pred_check
      _
    $region7: #{value_function_forward.1} parent=1 // pred_check_branch
      %17 = sbr.rel (0) target = $region9
    $region8: #{value_function_forward.1} parent=1 // pred_region
      _
    $region9: #{value_function_forward.1} parent=1 // pred_fallthru
      _
    // Predicated region
    $region10: #{value_function_forward.1} parent=1 // pred_check
      _
    $region11: #{value_function_forward.1} parent=1 // pred_check_branch
      %19 = sbr.rel (0) target = $region13
    $region12: #{value_function_forward.1} parent=1 // pred_region
      _
    $region13: #{value_function_forward.1} parent=1 // pred_fallthru
      _
    // Predicated region
    $region14: #{value_function_forward.1} parent=1 // pred_check
      _
    $region15: #{value_function_forward.1} parent=1 // pred_check_branch
      %21 = sbr.rel (0) target = $region17
    $region16: #{value_function_forward.1} parent=1 // pred_region
      _
    $region17: #{value_function_forward.1} parent=1 // pred_fallthru
      _
    // Predicated region
    $region18: #{value_function_forward.1} parent=1 // pred_check
      _
    $region19: #{value_function_forward.1} parent=1 // pred_check_branch
      %23 = sbr.rel (0) target = $region21
    $region20: #{value_function_forward.1} parent=1 // pred_region
      _
    $region21: #{value_function_forward.1} parent=1 // pred_fallthru
      _
    // Predicated region
    $region22: #{value_function_forward.1} parent=1 // pred_check
      _
    $region23: #{value_function_forward.1} parent=1 // pred_check_branch
      %25 = sbr.rel (0) target = $region25
    $region24: #{value_function_forward.1} parent=1 // pred_region
      _
    $region25: #{value_function_forward.1} parent=1 // pred_fallthru
      _
    // Predicated region
    $region26: #{value_function_forward.1} parent=1 // pred_check
      _
    $region27: #{value_function_forward.1} parent=1 // pred_check_branch
      %27 = sbr.rel (0) target = $region29
    $region28: #{value_function_forward.1} parent=1 // pred_region
      _
    $region29: #{value_function_forward.1} parent=1 // pred_fallthru
      _
    %v29 = vld [vmem:[%s0] sm:$0xff]
    %v30 = vld [vmem:[%s0 + $0x8] sm:$0xff]
    %v31 = vld [vmem:[%s0 + $0x10] sm:$0xff]
    %v32 = vld [vmem:[%s0 + $0x18] sm:$0xff]
    %v33 = vld [vmem:[%s0 + $0x20] sm:$0xff]
    %v34 = vld [vmem:[%s0 + $0x28] sm:$0xff]
    %v35 = vld [vmem:[%s0 + $0x30] sm:$0xff]
    %v36 = vld [vmem:[%s0 + $0x38] sm:$0xff]
    %v37 = vld [vmem:[%s0 + $0x40] sm:$0xff]
    %v38 = vld [vmem:[%s0 + $0x48] sm:$0xff]
    %v39 = vld [vmem:[%s0 + $0x50] sm:$0xff]
    %v40 = vld [vmem:[%s0 + $0x58] sm:$0xff]
    %v41 = vld [vmem:[%s0 + $0x60] sm:$0xff]
    %v42 = vld [vmem:[%s0 + $0x68] sm:$0xff]
    %v43 = vld [vmem:[%s0 + $0x70] sm:$0xff]
    %v44 = vld [vmem:[%s0 + $0x78] sm:$0xff]
    %v45 = vpack.c.bf16 %v30, %v29
    %v46 = vpack.c.bf16 %v32, %v31
    %v47 = vpack.c.bf16 %v34, %v33
    %v48 = vpack.c.bf16 %v36, %v35
    %v49 = vpack.c.bf16 %v38, %v37
    %v50 = vpack.c.bf16 %v40, %v39
    %v51 = vpack.c.bf16 %v42, %v41
    %v52 = vpack.c.bf16 %v44, %v43
    %v53 = vld [vmem:[%s1] sm:$0xf]
    %v54 = vld [vmem:[%s1 + $0x4] sm:$0xf]
    %v55 = vld [vmem:[%s1 + $0x8] sm:$0xf]
    %v56 = vld [vmem:[%s1 + $0xc] sm:$0xf]
    %v57 = vld [vmem:[%s1 + $0x10] sm:$0xf]
    %v58 = vld [vmem:[%s1 + $0x14] sm:$0xf]
    %v59 = vld [vmem:[%s1 + $0x18] sm:$0xf]
    %v60 = vld [vmem:[%s1 + $0x1c] sm:$0xf]
    %v61 = vld [vmem:[%s2] sm:$0xff]
    %v62 = vld [vmem:[%s2 + $0x8] sm:$0xff]
    %v63 = vld [vmem:[%s2 + $0x10] sm:$0xff]
    %v64 = vld [vmem:[%s2 + $0x18] sm:$0xff]
    %v65 = vld [vmem:[%s2 + $0x20] sm:$0xff]
    %v66 = vld [vmem:[%s2 + $0x28] sm:$0xff]
    %v67 = vld [vmem:[%s2 + $0x30] sm:$0xff]
    %v68 = vld [vmem:[%s2 + $0x38] sm:$0xff]
    %70 = vset.pattern.permute.xlu0 0
    %71 = vperm.xlu0 %70, %v61
    %v72 = vpop.permute.xlu0 %71
    %75 = vset.pattern.permute.xlu0 0
    %76 = vperm.xlu0 %75, %v62
    %v77 = vpop.permute.xlu0 %76
    %80 = vset.pattern.permute.xlu0 0
    %81 = vperm.xlu0 %80, %v63
    %v82 = vpop.permute.xlu0 %81
    %85 = vset.pattern.permute.xlu0 0
    %86 = vperm.xlu0 %85, %v64
    %v87 = vpop.permute.xlu0 %86
    %90 = vset.pattern.permute.xlu0 0
    %91 = vperm.xlu0 %90, %v65
    %v92 = vpop.permute.xlu0 %91
    %95 = vset.pattern.permute.xlu0 0
    %96 = vperm.xlu0 %95, %v66
    %v97 = vpop.permute.xlu0 %96
    %100 = vset.pattern.permute.xlu0 0
    %101 = vperm.xlu0 %100, %v67
    %v102 = vpop.permute.xlu0 %101
    %105 = vset.pattern.permute.xlu0 0
    %106 = vperm.xlu0 %105, %v68
    %v107 = vpop.permute.xlu0 %106
    %v117 = vunpack.c.l.b16 %v53
    %v118 = vunpack.c.l.b16 %v54
    %v119 = vunpack.c.l.b16 %v55
    %v120 = vunpack.c.l.b16 %v56
    %v121 = vunpack.c.l.b16 %v57
    %v122 = vunpack.c.l.b16 %v58
    %v123 = vunpack.c.l.b16 %v59
    %v124 = vunpack.c.l.b16 %v60
    %v125 = vpack.c.b16 %v118, %v117
    %v126 = vpack.c.b16 %v120, %v119
    %v127 = vpack.c.b16 %v122, %v121
    %v128 = vpack.c.b16 %v124, %v123
    %vm129 = vcmask 130048
    %v131 = vsel %vm129, %v125, 0
    %v134 = vsel %vm129, %v126, 0
    %v137 = vsel %vm129, %v127, 0
    %v140 = vsel %vm129, %v128, 0
    %v143 = vsel %vm129, %v45, 0
    %v146 = vsel %vm129, %v46, 0
    %v149 = vsel %vm129, %v47, 0
    %v152 = vsel %vm129, %v48, 0
    %v155 = vsel %vm129, %v49, 0
    %v158 = vsel %vm129, %v50, 0
    %v161 = vsel %vm129, %v51, 0
    %v164 = vsel %vm129, %v52, 0
    %166 = vmatprep.subr.bf16.mxu0 0
    %167 = vmatpush1.bf16.xpose.msra.mxu0 %v143
    %168 = vmatprep.subr.bf16.mxu0 0
    %169 = vmatpush1.bf16.xpose.msra.mxu0 %v146
    %170 = vmatprep.subr.bf16.mxu0 0
    %171 = vmatpush1.bf16.xpose.msra.mxu0 %v149
    %172 = vmatprep.subr.bf16.mxu0 0
    %173 = vmatpush1.bf16.xpose.msra.mxu0 %v152
    %174 = vmatprep.subr.bf16.mxu0 0
    %175 = vmatpush1.bf16.xpose.msra.mxu0 %v155
    %176 = vmatprep.subr.bf16.mxu0 0
    %177 = vmatpush1.bf16.xpose.msra.mxu0 %v158
    %178 = vmatprep.subr.bf16.mxu0 0
    %179 = vmatpush1.bf16.xpose.msra.mxu0 %v161
    %180 = vmatprep.subr.bf16.mxu0 0
    %181 = vmatpush1.bf16.xpose.msra.mxu0 %v164
    %182 = vmatprep.subr.bf16.mxu0 0
    %183 = vmatpush1.bf16.xpose.msra.mxu0 0
    %184 = vmatprep.subr.bf16.mxu0 0
    %185 = vmatpush1.bf16.xpose.msra.mxu0 0
    %186 = vmatprep.subr.bf16.mxu0 0
    %187 = vmatpush1.bf16.xpose.msra.mxu0 0
    %188 = vmatprep.subr.bf16.mxu0 0
    %189 = vmatpush1.bf16.xpose.msra.mxu0 0
    %190 = vmatprep.subr.bf16.mxu0 0
    %191 = vmatpush1.bf16.xpose.msra.mxu0 0
    %192 = vmatprep.subr.bf16.mxu0 0
    %193 = vmatpush1.bf16.xpose.msra.mxu0 0
    %194 = vmatprep.subr.bf16.mxu0 0
    %195 = vmatpush1.bf16.xpose.msra.mxu0 0
    %196 = vmatprep.subr.bf16.mxu0 0
    %197 = vmatpush1.bf16.xpose.msra.mxu0 0
    %198 = vmatprep.mubr.bf16.mxu0 0
    %199 = vmatmul.mubr.bf16.gmra.mrb[0].mxu0 %v131
    %v200 = vpop.f32.mrb[0].mxu0
    %v201 = vadd.f32 %v72, %v200
    %v202 = vpop.f32.mrb[0].mxu0
    %v203 = vpop.f32.mrb[0].mxu0
    %v204 = vadd.f32 %v77, %v203
    %v205 = vpop.f32.mrb[0].mxu0
    %206 = vmatprep.mubr.bf16.mxu0 0
    %207 = vmatmul.mubr.bf16.gmra.mrb[0].mxu0 %v134
    %v208 = vpop.f32.mrb[0].mxu0
    %v209 = vadd.f32 %v82, %v208
    %v210 = vpop.f32.mrb[0].mxu0
    %v211 = vpop.f32.mrb[0].mxu0
    %v212 = vadd.f32 %v87, %v211
    %v213 = vpop.f32.mrb[0].mxu0
    %214 = vmatprep.mubr.bf16.mxu0 0
    %215 = vmatmul.mubr.bf16.gmra.mrb[0].mxu0 %v137
    %v216 = vpop.f32.mrb[0].mxu0
    %v217 = vadd.f32 %v92, %v216
    %v218 = vpop.f32.mrb[0].mxu0
    %v219 = vpop.f32.mrb[0].mxu0
    %v220 = vadd.f32 %v97, %v219
    %v221 = vpop.f32.mrb[0].mxu0
    %222 = vmatprep.mubr.bf16.mxu0 0
    %223 = vmatmul.mubr.bf16.gmra.mrb[0].mxu0 %v140
    %v224 = vpop.f32.mrb[0].mxu0
    %v225 = vadd.f32 %v102, %v224
    %v226 = vpop.f32.mrb[0].mxu0
    %v227 = vpop.f32.mrb[0].mxu0
    %v228 = vadd.f32 %v107, %v227
    %v229 = vpop.f32.mrb[0].mxu0
    %230 = vdwg.mxu0
    %v231 = vmax.f32 %v201, 0.0
    %v232 = vmax.f32 %v204, 0.0
    %v233 = vmax.f32 %v209, 0.0
    %v234 = vmax.f32 %v212, 0.0
    %v235 = vmax.f32 %v217, 0.0
    %v236 = vmax.f32 %v220, 0.0
    %v237 = vmax.f32 %v225, 0.0
    %v238 = vmax.f32 %v228, 0.0
    %v239 = vpack.c.bf16 %v232, %v231
    %v240 = vpack.c.bf16 %v234, %v233
    %v241 = vpack.c.bf16 %v236, %v235
    %v242 = vpack.c.bf16 %v238, %v237
    %v243 = vld [vmem:[%s3] sm:$0xf]
    %v244 = vld [vmem:[%s3 + $0x4] sm:$0xf]
    %v245 = vld [vmem:[%s3 + $0x8] sm:$0xf]
    %v246 = vld [vmem:[%s3 + $0xc] sm:$0xf]
    %v247 = vld [vmem:[%s3 + $0x10] sm:$0xf]
    %v248 = vld [vmem:[%s3 + $0x14] sm:$0xf]
    %v249 = vld [vmem:[%s3 + $0x18] sm:$0xf]
    %v250 = vld [vmem:[%s3 + $0x1c] sm:$0xf]
    %s251 = sld [smem:[#allocation2]]
    %v252 = vld [vmem:[%s4] sm:$0xff]
    %v253 = vld [vmem:[%s4 + $0x8] sm:$0xff]
    %v254 = vld [vmem:[%s4 + $0x10] sm:$0xff]
    %v255 = vld [vmem:[%s4 + $0x18] sm:$0xff]
    %v256 = vld [vmem:[%s4 + $0x20] sm:$0xff]
    %v257 = vld [vmem:[%s4 + $0x28] sm:$0xff]
    %v258 = vld [vmem:[%s4 + $0x30] sm:$0xff]
    %v259 = vld [vmem:[%s4 + $0x38] sm:$0xff]
    %261 = vset.pattern.permute.xlu0 0
    %262 = vperm.xlu0 %261, %v252
    %v263 = vpop.permute.xlu0 %262
    %266 = vset.pattern.permute.xlu0 0
    %267 = vperm.xlu0 %266, %v253
    %v268 = vpop.permute.xlu0 %267
    %271 = vset.pattern.permute.xlu0 0
    %272 = vperm.xlu0 %271, %v254
    %v273 = vpop.permute.xlu0 %272
    %276 = vset.pattern.permute.xlu0 0
    %277 = vperm.xlu0 %276, %v255
    %v278 = vpop.permute.xlu0 %277
    %281 = vset.pattern.permute.xlu0 0
    %282 = vperm.xlu0 %281, %v256
    %v283 = vpop.permute.xlu0 %282
    %286 = vset.pattern.permute.xlu0 0
    %287 = vperm.xlu0 %286, %v257
    %v288 = vpop.permute.xlu0 %287
    %291 = vset.pattern.permute.xlu0 0
    %292 = vperm.xlu0 %291, %v258
    %v293 = vpop.permute.xlu0 %292
    %296 = vset.pattern.permute.xlu0 0
    %297 = vperm.xlu0 %296, %v259
    %v298 = vpop.permute.xlu0 %297
    %v308 = vunpack.c.l.b16 %v243
    %v309 = vunpack.c.l.b16 %v244
    %v310 = vunpack.c.l.b16 %v245
    %v311 = vunpack.c.l.b16 %v246
    %v312 = vunpack.c.l.b16 %v247
    %v313 = vunpack.c.l.b16 %v248
    %v314 = vunpack.c.l.b16 %v249
    %v315 = vunpack.c.l.b16 %v250
    %v316 = vpack.c.b16 %v309, %v308
    %v317 = vpack.c.b16 %v311, %v310
    %v318 = vpack.c.b16 %v313, %v312
    %v319 = vpack.c.b16 %v315, %v314
    %vm320 = vcmask 523264
    %v322 = vsel %vm320, %v316, 0
    %v325 = vsel %vm320, %v317, 0
    %v328 = vsel %vm320, %v318, 0
    %v331 = vsel %vm320, %v319, 0
    %333 = vmatprep.subr.bf16.mxu0 0
    %334 = vmatpush1.bf16.msra.mxu0 %v239
    %335 = vmatprep.subr.bf16.mxu0 0
    %336 = vmatpush1.bf16.msra.mxu0 %v240
    %337 = vmatprep.subr.bf16.mxu0 0
    %338 = vmatpush1.bf16.msra.mxu0 %v241
    %339 = vmatprep.subr.bf16.mxu0 0
    %340 = vmatpush1.bf16.msra.mxu0 %v242
    %341 = vmatprep.subr.bf16.mxu0 0
    %342 = vmatpush1.bf16.msra.mxu0 0
    %343 = vmatprep.subr.bf16.mxu0 0
    %344 = vmatpush1.bf16.msra.mxu0 0
    %345 = vmatprep.subr.bf16.mxu0 0
    %346 = vmatpush1.bf16.msra.mxu0 0
    %347 = vmatprep.subr.bf16.mxu0 0
    %348 = vmatpush1.bf16.msra.mxu0 0
    %349 = vmatprep.subr.bf16.mxu0 0
    %350 = vmatpush1.bf16.msra.mxu0 0
    %351 = vmatprep.subr.bf16.mxu0 0
    %352 = vmatpush1.bf16.msra.mxu0 0
    %353 = vmatprep.subr.bf16.mxu0 0
    %354 = vmatpush1.bf16.msra.mxu0 0
    %355 = vmatprep.subr.bf16.mxu0 0
    %356 = vmatpush1.bf16.msra.mxu0 0
    %357 = vmatprep.subr.bf16.mxu0 0
    %358 = vmatpush1.bf16.msra.mxu0 0
    %359 = vmatprep.subr.bf16.mxu0 0
    %360 = vmatpush1.bf16.msra.mxu0 0
    %361 = vmatprep.subr.bf16.mxu0 0
    %362 = vmatpush1.bf16.msra.mxu0 0
    %363 = vmatprep.subr.bf16.mxu0 0
    %364 = vmatpush1.bf16.msra.mxu0 0
    %365 = vmatprep.mubr.bf16.mxu0 0
    %366 = vmatmul.mubr.bf16.gmra.mrb[0].mxu0 %v322
    %v367 = vpop.f32.mrb[0].mxu0
    %v368 = vadd.f32 %v263, %v367
    %v369 = vpop.f32.mrb[0].mxu0
    %v370 = vpop.f32.mrb[0].mxu0
    %v371 = vadd.f32 %v268, %v370
    %v372 = vpop.f32.mrb[0].mxu0
    %373 = vmatprep.mubr.bf16.mxu0 0
    %374 = vmatmul.mubr.bf16.gmra.mrb[0].mxu0 %v325
    %v375 = vpop.f32.mrb[0].mxu0
    %v376 = vadd.f32 %v273, %v375
    %v377 = vpop.f32.mrb[0].mxu0
    %v378 = vpop.f32.mrb[0].mxu0
    %v379 = vadd.f32 %v278, %v378
    %v380 = vpop.f32.mrb[0].mxu0
    %381 = vmatprep.mubr.bf16.mxu0 0
    %382 = vmatmul.mubr.bf16.gmra.mrb[0].mxu0 %v328
    %v383 = vpop.f32.mrb[0].mxu0
    %v384 = vadd.f32 %v283, %v383
    %v385 = vpop.f32.mrb[0].mxu0
    %v386 = vpop.f32.mrb[0].mxu0
    %v387 = vadd.f32 %v288, %v386
    %v388 = vpop.f32.mrb[0].mxu0
    %389 = vmatprep.mubr.bf16.mxu0 0
    %390 = vmatmul.mubr.bf16.gmra.mrb[0].mxu0 %v331
    %v391 = vpop.f32.mrb[0].mxu0
    %v392 = vadd.f32 %v293, %v391
    %v393 = vpop.f32.mrb[0].mxu0
    %v394 = vpop.f32.mrb[0].mxu0
    %v395 = vadd.f32 %v298, %v394
    %v396 = vpop.f32.mrb[0].mxu0
    %397 = vdwg.mxu0
    %v398 = vmax.f32 %v368, 0.0
    %v399 = vmax.f32 %v371, 0.0
    %v400 = vmax.f32 %v376, 0.0
    %v401 = vmax.f32 %v379, 0.0
    %v402 = vmax.f32 %v384, 0.0
    %v403 = vmax.f32 %v387, 0.0
    %v404 = vmax.f32 %v392, 0.0
    %v405 = vmax.f32 %v395, 0.0
    %v406 = vld [vmem:[%s5] sm:$0xff]
    %v407 = vld [vmem:[%s5 + $0x8] sm:$0xff]
    %v408 = vld [vmem:[%s5 + $0x10] sm:$0xff]
    %v409 = vld [vmem:[%s5 + $0x18] sm:$0xff]
    %v410 = vld [vmem:[%s5 + $0x20] sm:$0xff]
    %v411 = vld [vmem:[%s5 + $0x28] sm:$0xff]
    %v412 = vld [vmem:[%s5 + $0x30] sm:$0xff]
    %v413 = vld [vmem:[%s5 + $0x38] sm:$0xff]
    %415 = vset.pattern.permute.xlu0 0
    %416 = vperm.xlu0 %415, %v406
    %v417 = vpop.permute.xlu0 %416
    %420 = vset.pattern.permute.xlu0 0
    %421 = vperm.xlu0 %420, %v407
    %v422 = vpop.permute.xlu0 %421
    %425 = vset.pattern.permute.xlu0 0
    %426 = vperm.xlu0 %425, %v408
    %v427 = vpop.permute.xlu0 %426
    %430 = vset.pattern.permute.xlu0 0
    %431 = vperm.xlu0 %430, %v409
    %v432 = vpop.permute.xlu0 %431
    %435 = vset.pattern.permute.xlu0 0
    %436 = vperm.xlu0 %435, %v410
    %v437 = vpop.permute.xlu0 %436
    %440 = vset.pattern.permute.xlu0 0
    %441 = vperm.xlu0 %440, %v411
    %v442 = vpop.permute.xlu0 %441
    %445 = vset.pattern.permute.xlu0 0
    %446 = vperm.xlu0 %445, %v412
    %v447 = vpop.permute.xlu0 %446
    %450 = vset.pattern.permute.xlu0 0
    %451 = vperm.xlu0 %450, %v413
    %v452 = vpop.permute.xlu0 %451
    %v454 = vmul.f32 %v398, %v417
    %v455 = vmul.f32 %v399, %v422
    %v456 = vmul.f32 %v400, %v427
    %v457 = vmul.f32 %v401, %v432
    %v458 = vmul.f32 %v402, %v437
    %v459 = vmul.f32 %v403, %v442
    %v460 = vmul.f32 %v404, %v447
    %v461 = vmul.f32 %v405, %v452
    %v462 = vadd.f32 %v454, %v455
    %v463 = vadd.f32 %v462, %v456
    %v464 = vadd.f32 %v463, %v457
    %v465 = vadd.f32 %v464, %v458
    %v466 = vadd.f32 %v465, %v459
    %v467 = vadd.f32 %v466, %v460
    %v468 = vadd.f32 %v467, %v461
    %v469 = vrot.slane %v468, 4
    %v470 = vadd.f32 %v468, %v469
    %v471 = vrot.slane %v470, 2
    %v472 = vadd.f32 %v470, %v471
    %v473 = vrot.slane %v472, 1
    %v474 = vadd.f32 %v472, %v473
    %v475 = vstv %s251
    %v476 = vadd.f32 %v474, %v475
    %477 = vst [vmem:[#allocation3] sm:$0x1] %v476
    // Predicated region
    $region30: #{value_function_forward.1} parent=1 // pred_check
      _
    $region31: #{value_function_forward.1} parent=1 // pred_check_branch
      %479 = sbr.rel (0) target = $region33
    $region32: #{value_function_forward.1} parent=1 // pred_region
      %s481 = ssub.s32 16, 16
      %482 = vsyncadd [#allocation4], %s481
      %s484 = sshll.u32 [#allocation3], 4
      %s485 = int_to_ptr.vmem [resolvable:$true] %s484
      %487 = dma.vmem_to_hbm [thread:$0]  %s485, 16, %s7, [#allocation4]
    $region33: #{value_function_forward.1} parent=1 // pred_fallthru
      _
    // Predicated region
    $region34: #{value_function_forward.1} parent=1 // pred_check
      _
    $region35: #{value_function_forward.1} parent=1 // pred_check_branch
      %489 = sbr.rel (0) target = $region37
    $region36: #{value_function_forward.1} parent=1 // pred_region
      %490 = dma.done [#allocation4], 16
    $region37: #{value_function_forward.1} parent=1 // pred_fallthru
      _
    %491 = vsyncpa [#allocation4], 1

</llo_original>
